<compile_context>
chip_gen: v7x
topology: tpu7x:2x2x1
jax: 0.10.0
libtpu: 0.0.40
codegen_flags: <defaults>
</compile_context>

<pallas_src>
import functools

import jax
import jax.numpy as jnp
from jax.experimental import pallas as pl
from jax.experimental.pallas import tpu as pltpu


def _soft_ce_kernel(x_ref, t_ref, loss_ref, *, multiplier, n_rows, tile_n, mask_rows):
    """One batch tile: per-row soft-target cross entropy, classes on lanes."""
    x = x_ref[...].astype(jnp.float32)                            # (tile_n, C)
    if multiplier != 1.0:
        x = x * multiplier
    t = t_ref[...].astype(jnp.float32)                            # (tile_n, C)

    # Numerically-stable logsumexp along the class (lane) axis.
    m = jnp.max(x, axis=-1, keepdims=True)                        # (tile_n, 1)
    e = jnp.exp(x - m)                                            # EUP
    lse = m + jnp.log(jnp.sum(e, axis=-1, keepdims=True))         # (tile_n, 1)

    # sum_c(-t * (x - lse)) == lse * sum_c(t) - sum_c(t * x)
    sum_t = jnp.sum(t, axis=-1, keepdims=True)                    # (tile_n, 1)
    sum_tx = jnp.sum(t * x, axis=-1, keepdims=True)               # (tile_n, 1)
    loss = lse * sum_t - sum_tx                                   # (tile_n, 1)

    if mask_rows:
        # Last tile may be partial: rows >= n_rows were read from a clipped
        # boundary DMA (undefined contents) and must not contribute.
        row = (pl.program_id(0) * tile_n
               + jax.lax.broadcasted_iota(jnp.int32, (tile_n, 1), 0))
        loss = jnp.where(row < n_rows, loss, 0.0)

    loss_ref[...] = loss


def _round_up(a, b):
    return ((a + b - 1) // b) * b


def soft_target_cross_entropy(
    x,
    target,
    multiplier=1.0,
    *,
    vmem_budget_bytes=24 * 1024 * 1024,   # per-step working-set budget (v7x-safe)
    vmem_limit_bytes=48 * 1024 * 1024,    # scoped VMEM request (covers v5e's 16 MiB default)
    max_tile_n=2048,
):
    """Pallas implementation of timm's SoftTargetCrossEntropy.forward."""
    assert x.shape == target.shape and x.ndim >= 2
    C = x.shape[-1]
    x = x.reshape(-1, C)
    target = target.reshape(-1, C)
    N = x.shape[0]

    # Sublane granularity: 16 if any input is sub-32-bit (bf16 packs 16 rows/vreg).
    sub = 16 if min(x.dtype.itemsize, target.dtype.itemsize) < 4 else 8

    # Per-row bytes in the steady state:
    #   2 inputs x 2 pipeline buffers x C x itemsize   (DMA'd tiles)
    # + ~4 f32 (tile_n, C)-sized temporaries for the in-kernel math.
    per_row_bytes = 2 * C * (x.dtype.itemsize + target.dtype.itemsize) + 4 * C * 4
    tile_n = max(sub, (vmem_budget_bytes // per_row_bytes) // sub * sub)
    tile_n = min(tile_n, max_tile_n)
    tile_n = min(tile_n, _round_up(N, sub))
    # TODO(synk): class-tiled online logsumexp for vocab-scale C (current kernel
    # loads the full class dimension per row block).

    num_tiles = pl.cdiv(N, tile_n)
    mask_rows = (N % tile_n) != 0   # last tile partial -> mask in-kernel (no jnp.pad copy)

    kernel = functools.partial(
        _soft_ce_kernel,
        multiplier=float(multiplier),
        n_rows=N,
        tile_n=tile_n,
        mask_rows=mask_rows,
    )

    per_row_loss = pl.pallas_call(
        kernel,
        out_shape=jax.ShapeDtypeStruct((N, 1), jnp.float32),
        grid_spec=pltpu.PrefetchScalarGridSpec(
            num_scalar_prefetch=0,
            grid=(num_tiles,),
            in_specs=[
                pl.BlockSpec((tile_n, C), lambda i: (i, 0)),
                pl.BlockSpec((tile_n, C), lambda i: (i, 0)),
            ],
            out_specs=pl.BlockSpec((tile_n, 1), lambda i: (i, 0)),
        ),
        compiler_params=pltpu.CompilerParams(
            # Independent per-tile work -> parallel (megacore sharding on v7x).
            dimension_semantics=("parallel",),
            vmem_limit_bytes=vmem_limit_bytes,
        ),
    )(x, target)

    # Masked (out-of-range) rows are exactly 0, so summing everything is safe.
    return jnp.sum(per_row_loss) / jnp.float32(N)


def _reference(x, target, multiplier=1.0):
    x = x.reshape(-1, x.shape[-1])
    target = target.reshape(-1, target.shape[-1])
    log_sm = jax.nn.log_softmax(multiplier * x.astype(jnp.float32), axis=-1)
    return jnp.mean(jnp.sum(-target.astype(jnp.float32) * log_sm, axis=-1))


if __name__ == "__main__":
    key = jax.random.PRNGKey(0)
    k1, k2, k3, k4, k5, k6, k7, k8 = jax.random.split(key, 8)

    # Case 1: small f32, divisible batch.
    N, C = 16, 32
    x = jax.random.normal(k1, (N, C), dtype=jnp.float32)
    target = jax.nn.softmax(jax.random.normal(k2, (N, C), dtype=jnp.float32), axis=-1)
    loss = jax.block_until_ready(soft_target_cross_entropy(x, target, multiplier=1.0))
    ref = _reference(x, target, multiplier=1.0)
    assert jnp.allclose(loss, ref, atol=1e-5, rtol=1e-5), (loss, ref)

    # Case 2: non-divisible batch + non-unit multiplier (partial-tile masking path).
    N2, C2 = 13, 32
    x2 = jax.random.normal(k3, (N2, C2), dtype=jnp.float32)
    target2 = jax.nn.softmax(jax.random.normal(k4, (N2, C2), dtype=jnp.float32), axis=-1)
    loss2 = jax.block_until_ready(soft_target_cross_entropy(x2, target2, multiplier=2.0))
    ref2 = _reference(x2, target2, multiplier=2.0)
    assert jnp.allclose(loss2, ref2, atol=1e-5, rtol=1e-5), (loss2, ref2)

    # Case 3: bf16 inputs (half the HBM traffic; compute stays f32 in-kernel).
    N3, C3 = 16, 128
    x3 = jax.random.normal(k5, (N3, C3), dtype=jnp.float32).astype(jnp.bfloat16)
    target3 = jax.nn.softmax(
        jax.random.normal(k6, (N3, C3), dtype=jnp.float32), axis=-1
    ).astype(jnp.bfloat16)
    loss3 = jax.block_until_ready(soft_target_cross_entropy(x3, target3, multiplier=1.0))
    ref3 = _reference(x3, target3, multiplier=1.0)
    assert jnp.allclose(loss3, ref3, atol=1e-4, rtol=1e-4), (loss3, ref3)

    # Case 4: multi-tile grid with a ragged last tile (forced small tile).
    N4, C4 = 100, 256
    x4 = jax.random.normal(k7, (N4, C4), dtype=jnp.float32)
    target4 = jax.nn.softmax(jax.random.normal(k8, (N4, C4), dtype=jnp.float32), axis=-1)
    loss4 = jax.block_until_ready(
        soft_target_cross_entropy(x4, target4, multiplier=1.0, max_tile_n=64)
    )
    ref4 = _reference(x4, target4, multiplier=1.0)
    assert jnp.allclose(loss4, ref4, atol=1e-5, rtol=1e-5), (loss4, ref4)

    print("KERNEL_OK")
</pallas_src>

<mosaic_0001>
module attributes {stable_mosaic.version = 11 : i64} {
  func.func @_soft_ce_kernel(%arg0: i32, %arg1: memref<16x32xf32, #tpu.memory_space<vmem>>, %arg2: memref<16x32xf32, #tpu.memory_space<vmem>>, %arg3: memref<16x1xf32, #tpu.memory_space<vmem>>) attributes {dimension_semantics = [#tpu.dimension_semantics<parallel>], iteration_bounds = array<i64: 1>, scalar_prefetch = 0 : i64, scratch_operands = 0 : i64, tpu.core_type = #tpu.core_type<tc>, window_params = [{transform_indices = @transform_0, window_bounds = array<i64: 16, 32>}, {transform_indices = @transform_1, window_bounds = array<i64: 16, 32>}, {transform_indices = @transform_2, window_bounds = array<i64: 16, 1>}]} {
    %c0 = arith.constant 0 : index
    %c0_0 = arith.constant 0 : index
    %0 = vector.load %arg1[%c0, %c0_0] : memref<16x32xf32, #tpu.memory_space<vmem>>, vector<16x32xf32>
    %c0_1 = arith.constant 0 : index
    %c0_2 = arith.constant 0 : index
    %1 = vector.load %arg2[%c0_1, %c0_2] : memref<16x32xf32, #tpu.memory_space<vmem>>, vector<16x32xf32>
    %cst = arith.constant dense<0xFF800000> : vector<16xf32>
    %2 = vector.multi_reduction <maximumf>, %0, %cst [1] : vector<16x32xf32> to vector<16xf32>
    %3 = vector.shape_cast %2 : vector<16xf32> to vector<16x1xf32>
    %4 = vector.broadcast %3 : vector<16x1xf32> to vector<16x32xf32>
    %5 = arith.subf %0, %4 : vector<16x32xf32>
    %6 = math.exp %5 : vector<16x32xf32>
    %cst_3 = arith.constant dense<0.000000e+00> : vector<16xf32>
    %7 = vector.multi_reduction <add>, %6, %cst_3 [1] : vector<16x32xf32> to vector<16xf32>
    %8 = vector.shape_cast %7 : vector<16xf32> to vector<16x1xf32>
    %9 = math.log %8 : vector<16x1xf32>
    %10 = arith.addf %3, %9 : vector<16x1xf32>
    %cst_4 = arith.constant dense<0.000000e+00> : vector<16xf32>
    %11 = vector.multi_reduction <add>, %1, %cst_4 [1] : vector<16x32xf32> to vector<16xf32>
    %12 = vector.shape_cast %11 : vector<16xf32> to vector<16x1xf32>
    %13 = arith.mulf %1, %0 : vector<16x32xf32>
    %cst_5 = arith.constant dense<0.000000e+00> : vector<16xf32>
    %14 = vector.multi_reduction <add>, %13, %cst_5 [1] : vector<16x32xf32> to vector<16xf32>
    %15 = vector.shape_cast %14 : vector<16xf32> to vector<16x1xf32>
    %16 = arith.mulf %10, %12 : vector<16x1xf32>
    %17 = arith.subf %16, %15 : vector<16x1xf32>
    %c0_6 = arith.constant 0 : index
    %c0_7 = arith.constant 0 : index
    %18 = vector.load %arg3[%c0_6, %c0_7] : memref<16x1xf32, #tpu.memory_space<vmem>>, vector<16x1xf32>
    tpu.vector_store %arg3[%c0_6, %c0_7], %17 {strides = array<i32>} : memref<16x1xf32, #tpu.memory_space<vmem>>, vector<16x1xf32>,
    return
  }
  func.func @transform_0(%arg0: i32) -> (i32, i32) {
    %c0_i32 = arith.constant 0 : i32
    %c0_i32_0 = arith.constant 0 : i32
    return %arg0, %c0_i32 : i32, i32
  }
  func.func @transform_1(%arg0: i32) -> (i32, i32) {
    %c0_i32 = arith.constant 0 : i32
    %c0_i32_0 = arith.constant 0 : i32
    return %arg0, %c0_i32 : i32, i32
  }
  func.func @transform_2(%arg0: i32) -> (i32, i32) {
    %c0_i32 = arith.constant 0 : i32
    %c0_i32_0 = arith.constant 0 : i32
    return %arg0, %c0_i32 : i32, i32
  }
}

</mosaic_0001>

<llo_original>
// kernel: tpu_custom_call.1
$region0: #{tpu_custom_call.1}
  #allocation0 [shape = 'u32[]', space=smem, size = 0x4, offset = 0x4, fixed_abs, tag = 'smem constant byte address 0x4 - core index']
  #allocation1 [shape = 'u32[144,128]{1,0:T(1,128)}', space=vmem, size = 0x12000, scoped, tag = 'internal scratch']
  %s0 = inlined_call_operand.hbm [shape: f32[16,32], index: 0, kind: input, shape index: {}]
  %s1 = inlined_call_operand.hbm [shape: f32[16,32], index: 1, kind: input, shape index: {}]
  %s2 = inlined_call_operand.vmem [shape: f32[16,1], index: 2, kind: output, shape index: {}]
  %s3 = sld [smem:[#allocation0]]
  $region26: #{tpu_custom_call.1} parent=0
    _
  %s5 = ssub.s32 1, %s3
  %s6 = scalar_select 0, %s5, %s3
  $region1: #{tpu_custom_call.1} parent=0
    #allocation2 [shape = 'u8[8192]{0}', space=vmem, size = 0x2000, scoped, tag = 'input window, operand 0, single buffered']
    #allocation3 [shape = 's32[1]{0}', space=sflag, size = 0x4, scoped, tag = 'scoped memory for tpu_custom_call.1']
    #allocation4 [shape = 'u8[8192]{0}', space=vmem, size = 0x2000, scoped, tag = 'input window, operand 1, single buffered']
    #allocation5 [shape = 's32[1]{0}', space=sflag, size = 0x4, scoped, tag = 'scoped memory for tpu_custom_call.1']
    %7 = vsyncpa [#allocation3], 0
    %8 = vsyncpa [#allocation5], 0
    // Predicated region
    $region2: #{tpu_custom_call.1} parent=1 // pred_check
      _
    $region3: #{tpu_custom_call.1} parent=1 // pred_check_branch
      %10 = sbr.rel (0) target = $region5
    $region4: #{tpu_custom_call.1} parent=1 // pred_region
      %s12 = ssub.s32 256, 256
      %13 = vsyncadd [#allocation3], %s12
      %s14 = sshll.u32 [#allocation2], 4
      %s15 = int_to_ptr.vmem [resolvable:$true] %s14
      %20 = dma.hbm_to_vmem [thread:$0]  %s0, 256, %s15, [#allocation3], 128, 128, 8
    $region5: #{tpu_custom_call.1} parent=1 // pred_fallthru
      _
    // Predicated region
    $region6: #{tpu_custom_call.1} parent=1 // pred_check
      _
    $region7: #{tpu_custom_call.1} parent=1 // pred_check_branch
      %22 = sbr.rel (0) target = $region9
    $region8: #{tpu_custom_call.1} parent=1 // pred_region
      %s24 = ssub.s32 256, 256
      %25 = vsyncadd [#allocation5], %s24
      %s26 = sshll.u32 [#allocation4], 4
      %s27 = int_to_ptr.vmem [resolvable:$true] %s26
      %32 = dma.hbm_to_vmem [thread:$0]  %s1, 256, %s27, [#allocation5], 128, 128, 8
    $region9: #{tpu_custom_call.1} parent=1 // pred_fallthru
      _
    // Predicated region
    $region10: #{tpu_custom_call.1} parent=1 // pred_check
      _
    $region11: #{tpu_custom_call.1} parent=1 // pred_check_branch
      %34 = sbr.rel (0) target = $region13
    $region12: #{tpu_custom_call.1} parent=1 // pred_region
      %35 = dma.done [#allocation3], 256
    $region13: #{tpu_custom_call.1} parent=1 // pred_fallthru
      _
    // Predicated region
    $region14: #{tpu_custom_call.1} parent=1 // pred_check
      _
    $region15: #{tpu_custom_call.1} parent=1 // pred_check_branch
      %37 = sbr.rel (0) target = $region17
    $region16: #{tpu_custom_call.1} parent=1 // pred_region
      %38 = dma.done [#allocation5], 256
    $region17: #{tpu_custom_call.1} parent=1 // pred_fallthru
      _
    %v39 = vld [vmem:[#allocation2] sm:$0xff]
    %v40 = vld [vmem:[#allocation2 + $0x8] sm:$0xff]
    %v41 = vld [vmem:[#allocation4] sm:$0xff]
    %v42 = vld [vmem:[#allocation4 + $0x8] sm:$0xff]
    %vm43 = vcmask 261120
    %v44 = vsel %vm43, %v39, -inf
    %45 = vmax.xlane.f32.xlu0 %v44
    %v46 = vpop.xlane.xlu0 %45
    %v47 = vsel %vm43, %v40, -inf
    %48 = vmax.xlane.f32.xlu0 %v47
    %v49 = vpop.xlane.xlu0 %48
    %v50 = vsub.f32 %v39, %v46
    %v51 = vsub.f32 %v40, %v49
    %v52 = vmul.f32 %v50, 1.442695
    %v53 = vpow.pop %v52
    %v54 = vmul.f32 %v51, 1.442695
    %v55 = vpow.pop %v54
    %v56 = vsel %vm43, %v53, 0.0
    %57 = vadd.xlane.f32.xlu0 %v56
    %v58 = vpop.xlane.xlu0 %57
    %v59 = vsel %vm43, %v55, 0.0
    %60 = vadd.xlane.f32.xlu0 %v59
    %v61 = vpop.xlane.xlu0 %60
    %v62 = vlog2.pop %v58
    %v63 = vmul.f32 %v62, 0.6931472
    %v64 = vlog2.pop %v61
    %v65 = vmul.f32 %v64, 0.6931472
    %v66 = vadd.f32 %v46, %v63
    %v67 = vadd.f32 %v49, %v65
    %v68 = vsel %vm43, %v41, 0.0
    %69 = vadd.xlane.f32.xlu0 %v68
    %v70 = vpop.xlane.xlu0 %69
    %v71 = vsel %vm43, %v42, 0.0
    %72 = vadd.xlane.f32.xlu0 %v71
    %v73 = vpop.xlane.xlu0 %72
    %v74 = vmul.f32 %v41, %v39
    %v75 = vmul.f32 %v42, %v40
    %v76 = vsel %vm43, %v74, 0.0
    %77 = vadd.xlane.f32.xlu0 %v76
    %v78 = vpop.xlane.xlu0 %77
    %v79 = vsel %vm43, %v75, 0.0
    %80 = vadd.xlane.f32.xlu0 %v79
    %v81 = vpop.xlane.xlu0 %80
    %v82 = vmul.f32 %v66, %v70
    %v83 = vmul.f32 %v67, %v73
    %v84 = vsub.f32 %v82, %v78
    %v85 = vsub.f32 %v83, %v81
    %vm86 = vcmask 7168
    %87 = vst.msk [vmem:[%s2] sm:$0xff] %vm86, %v84
    %88 = vst.msk [vmem:[%s2 + $0x8] sm:$0xff] %vm86, %v85
    // Predicated region
    $region18: #{tpu_custom_call.1} parent=1 // pred_check
      _
    $region19: #{tpu_custom_call.1} parent=1 // pred_check_branch
      %90 = sbr.rel (0) target = $region21
    $region20: #{tpu_custom_call.1} parent=1 // pred_region
      _
    $region21: #{tpu_custom_call.1} parent=1 // pred_fallthru
      _
    // Predicated region
    $region22: #{tpu_custom_call.1} parent=1 // pred_check
      _
    $region23: #{tpu_custom_call.1} parent=1 // pred_check_branch
      %92 = sbr.rel (0) target = $region25
    $region24: #{tpu_custom_call.1} parent=1 // pred_region
      _
    $region25: #{tpu_custom_call.1} parent=1 // pred_fallthru
      _
    %93 = vsyncpa [#allocation3], 1
    %94 = vsyncpa [#allocation5], 1

</llo_original>
